<compile_context>
chip_gen: v7x
topology: tpu7x:2x2x1
jax: 0.10.0
libtpu: 0.0.40
codegen_flags: <defaults>
</compile_context>

<pallas_src>
import math
import functools

import numpy as np
import jax
import jax.numpy as jnp
from jax.experimental import pallas as pl
from jax.experimental.pallas import tpu as pltpu


# ---------------------------------------------------------------------------
# Kernel 1: Gram-matrix auto-correlation (MXU) fused with the channel mean.
#   G[t, s]   += sum_c q[b, t, c] * k[b, s, c]          (per channel tile, MXU)
#   corr2[u]   = (1/C) * sum_t G[t, (t + u) % L]        (finalize, XLU/VPU)
# Grid: (B, C // TC); the channel axis is the (last) reduction axis.
# ---------------------------------------------------------------------------
def _corr_gram_kernel(q_ref, k_ref, o_ref, acc_ref, *, length, inv_channels,
                      nbits, score_dtype):
    c_idx = pl.program_id(1)

    @pl.when(c_idx == 0)
    def _():
        acc_ref[...] = jnp.zeros_like(acc_ref)

    q = q_ref[0].astype(score_dtype)                       # (L, TC)
    k = k_ref[0].astype(score_dtype)                       # (L, TC)
    # G[t, s] += sum_c q[t, c] * k[s, c]   -- NT matmul on the MXU, f32 accumulation.
    acc_ref[...] += jax.lax.dot_general(
        q, k, (((1,), (1,)), ((), ())), preferred_element_type=jnp.float32)

    @pl.when(c_idx == pl.num_programs(1) - 1)
    def _():
        g = acc_ref[...]                                   # (L, L)
        row = jax.lax.broadcasted_iota(jnp.int32, (length, length), 0)
        # Align the wrapped diagonals into columns: net roll of row t by (-t) mod L,
        # applied via the binary decomposition of t (static lane rolls + selects).
        for j in range(nbits):
            amount = (length - (1 << j)) % length
            g = jnp.where((row & (1 << j)) != 0,
                          pltpu.roll(g, amount, axis=1), g)
        # Now g[t, u] = G[t, (t + u) % L];  channel-mean-normalised column sums.
        corr2 = jnp.sum(g, axis=0, keepdims=True) * inv_channels    # (1, L)
        o_ref[...] = corr2.reshape(1, 1, length)


# ---------------------------------------------------------------------------
# Kernel 2: time-delay aggregation (training variant).
#   out[b, c, t] = sum_i w[b, i] * v[b, c, (t + idx[i]) % L]
# Grid: (B, C // TC), both axes parallel; shifts / weights arrive via scalar prefetch.
# The channel tile is processed in vreg-sized sub-chunks, each stored exactly once.
# ---------------------------------------------------------------------------
def _delay_agg_kernel(shift_ref, w_ref, v_ref, o_ref, *, top_k, sub, n_sub):
    b = pl.program_id(0)
    # Hoist all scalar (SMEM) reads above the roll/FMA loops.
    shifts = [shift_ref[i] for i in range(top_k)]           # (L - idx) % L, precomputed
    weights = [w_ref[b, i] for i in range(top_k)]

    def body(ci, carry):
        off = pl.multiple_of(ci * sub, sub)
        v = v_ref[0, pl.ds(off, sub), :]                     # (sub, L) VMEM load
        acc = pltpu.roll(v, shifts[0], axis=1) * weights[0]
        for i in range(1, top_k):                            # small static unrolled loop
            acc = acc + pltpu.roll(v, shifts[i], axis=1) * weights[i]
        o_ref[0, pl.ds(off, sub), :] = acc                   # single store per chunk
        return carry

    jax.lax.fori_loop(0, n_sub, body, 0)


# ---------------------------------------------------------------------------
# Tiling helpers.
# ---------------------------------------------------------------------------
def _pick_channel_tile(channels, target, align):
    """Largest `align`-aligned divisor of `channels` that is <= target.

    Falls back to the smallest aligned divisor above target, and finally to the
    full channel count (always legal: a block dim equal to the array dim)."""
    if channels <= target:
        return channels
    divisors = [d for d in range(align, channels + 1, align) if channels % d == 0]
    small = [d for d in divisors if d <= target]
    if small:
        return small[-1]
    if divisors:
        return divisors[0]
    return channels


def _pick_subtile(tile_channels, length):
    """Sub-chunk (sublane) size so one chunk stays vreg-resident (~16 KiB)."""
    target = max(8, (((16 * 1024) // (4 * length)) // 8) * 8)
    for s in range(target, 7, -8):
        if tile_channels % s == 0:
            return s
    return tile_channels


# ---------------------------------------------------------------------------
# Wrapper: full forward pass (training path).
# ---------------------------------------------------------------------------
def multihead_autocorrelation_attention(queries, keys, values, *, factor=1,
                                        qk_channel_tile=512, v_channel_tile=None,
                                        use_bf16_scores=False):
    """Forward pass of MultiHead_AutoCorrelation_Attention (training path).

    queries: [B, L, H, E], keys: [B, S, H, E], values: [B, S, H, D]
    returns: (V [B, L, H, D] float32, None)
    """
    B, L, H, E = queries.shape
    _, S, _, D = values.shape
    queries = queries.astype(jnp.float32)
    keys = keys.astype(jnp.float32)
    values = values.astype(jnp.float32)

    if L > S:
        # PyTorch pads with zeros_like(queries[:, :L-S, :]) (assumes E == D).
        values = jnp.concatenate([values, jnp.zeros((B, L - S, H, D), jnp.float32)], axis=1)
        keys = jnp.concatenate([keys, jnp.zeros((B, L - S, H, E), jnp.float32)], axis=1)
    else:
        values = values[:, :L]
        keys = keys[:, :L]

    HE, HD = H * E, H * D

    # ---- Kernel 1: period-based dependency discovery on the MXU ----
    # q/k are consumed in their native [B, L, H*E] layout: a metadata reshape only,
    # no wrapper transpose / HBM relayout.
    q_cl = queries.reshape(B, L, HE)
    k_cl = keys.reshape(B, L, HE)

    tc_qk = _pick_channel_tile(HE, qk_channel_tile, 128)     # last-dim tile: 128-aligned
    nbits = max(1, (L - 1).bit_length())
    score_dtype = jnp.bfloat16 if use_bf16_scores else jnp.float32

    corr2 = pl.pallas_call(
        functools.partial(_corr_gram_kernel, length=L, inv_channels=1.0 / HE,
                          nbits=nbits, score_dtype=score_dtype),
        out_shape=jax.ShapeDtypeStruct((B, 1, L), jnp.float32),
        grid_spec=pltpu.PrefetchScalarGridSpec(
            num_scalar_prefetch=0,
            grid=(B, HE // tc_qk),
            in_specs=[
                pl.BlockSpec((1, L, tc_qk), lambda b, c: (b, 0, c)),
                pl.BlockSpec((1, L, tc_qk), lambda b, c: (b, 0, c)),
            ],
            out_specs=pl.BlockSpec((1, 1, L), lambda b, c: (b, 0, 0)),
            scratch_shapes=[pltpu.VMEM((L, L), jnp.float32)],
        ),
        compiler_params=pltpu.CompilerParams(
            dimension_semantics=("parallel", "arbitrary")),
    )(q_cl, k_cl)

    # corr2[b, u] = (1/C) * sum_{c,t} q[b,t,c] * k[b,(t+u)%L,c]; the true delay
    # correlation is corr[b, tau] = corr2[b, (L - tau) % L] -> fold the lane-order
    # flip into the tiny [B, L] top-k glue below.
    corr2 = corr2[:, 0, :]                                    # [B, L]
    flip = (L - jnp.arange(L)) % L
    mean_value = corr2[:, flip]                               # == mean_{H,E} corr   [B, L]

    # ---- Tiny top-k / softmax glue (plain JAX) ----
    top_k = max(1, int(factor * math.log(L)))
    _, index = jax.lax.top_k(jnp.mean(mean_value, axis=0), top_k)   # [top_k] shared delays
    weights = jnp.take(mean_value, index, axis=1)                   # [B, top_k]
    tmp_corr = jax.nn.softmax(weights, axis=-1)                     # [B, top_k]
    shifts = ((L - index) % L).astype(jnp.int32)   # roll(v, -idx) == roll by (L - idx) % L

    # ---- Kernel 2: time-delay aggregation (training variant) ----
    # Time must sit on lanes for the dynamic rolls, so v is relayouted once to
    # [B, H*D, L]; the result is transposed back afterwards.
    v_cl = jnp.transpose(values, (0, 2, 3, 1)).reshape(B, HD, L)

    if v_channel_tile is None:
        v_channel_tile = max(64, (512 * 1024) // (4 * L))     # ~512 KiB input block
    tc_v = _pick_channel_tile(HD, v_channel_tile, 8)          # sublane tile: 8-aligned
    sub = _pick_subtile(tc_v, L)

    delays = pl.pallas_call(
        functools.partial(_delay_agg_kernel, top_k=top_k, sub=sub, n_sub=tc_v // sub),
        out_shape=jax.ShapeDtypeStruct((B, HD, L), jnp.float32),
        grid_spec=pltpu.PrefetchScalarGridSpec(
            num_scalar_prefetch=2,   # shifts -> SMEM, per-batch softmax weights -> SMEM
            grid=(B, HD // tc_v),
            in_specs=[pl.BlockSpec((1, tc_v, L), lambda b, c, s, w: (b, c, 0))],
            out_specs=pl.BlockSpec((1, tc_v, L), lambda b, c, s, w: (b, c, 0)),
        ),
        compiler_params=pltpu.CompilerParams(
            dimension_semantics=("parallel", "parallel")),
    )(shifts, tmp_corr.astype(jnp.float32), v_cl)

    V = jnp.transpose(delays.reshape(B, H, D, L), (0, 3, 1, 2))      # [B, L, H, D]
    return V, None   # output_attention=False


# ---------------- pure-JAX reference (mirrors the PyTorch code) ----------------
def reference_forward(queries, keys, values, *, factor=1):
    B, L, H, E = queries.shape
    _, S, _, D = values.shape
    if L > S:
        values = jnp.concatenate([values, jnp.zeros((B, L - S, H, D), jnp.float32)], axis=1)
        keys = jnp.concatenate([keys, jnp.zeros((B, L - S, H, E), jnp.float32)], axis=1)
    else:
        values = values[:, :L]
        keys = keys[:, :L]
    qp = jnp.transpose(queries, (0, 2, 3, 1))
    kp = jnp.transpose(keys, (0, 2, 3, 1))
    corr = jnp.fft.irfft(jnp.fft.rfft(qp, axis=-1) * jnp.conj(jnp.fft.rfft(kp, axis=-1)),
                         n=L, axis=-1)
    vp = jnp.transpose(values, (0, 2, 3, 1))                          # [B, H, D, L]
    top_k = max(1, int(factor * math.log(L)))
    mean_value = jnp.mean(corr, axis=(1, 2))                          # [B, L]
    _, index = jax.lax.top_k(jnp.mean(mean_value, axis=0), top_k)
    weights = jnp.stack([mean_value[:, index[i]] for i in range(top_k)], axis=-1)
    tmp_corr = jax.nn.softmax(weights, axis=-1)
    delays_agg = jnp.zeros_like(vp)
    for i in range(top_k):
        pattern = jnp.roll(vp, -int(index[i]), axis=-1)
        delays_agg = delays_agg + pattern * tmp_corr[:, i][:, None, None, None]
    return jnp.transpose(delays_agg, (0, 3, 1, 2))


if __name__ == "__main__":
    key = jax.random.PRNGKey(0)
    kq, kk_, kv = jax.random.split(key, 3)
    # L = 128 keeps the time axis lane-dense; H*E = H*D = 256 so the explicit
    # 128-wide channel tiles exercise both the kernel-1 channel reduction and the
    # kernel-2 parallel channel grid (plus the in-kernel sub-chunk loop).
    B, L, S, H, E, D = 2, 128, 128, 4, 64, 64
    queries = jax.random.normal(kq, (B, L, H, E), jnp.float32)
    keys = jax.random.normal(kk_, (B, S, H, E), jnp.float32)
    values = jax.random.normal(kv, (B, S, H, D), jnp.float32)

    V, attn = multihead_autocorrelation_attention(
        queries, keys, values, factor=1,
        qk_channel_tile=128,   # 2 reduction steps in kernel 1
        v_channel_tile=128)    # 2 parallel channel tiles in kernel 2
    V = jax.block_until_ready(V)

    V_ref = reference_forward(queries, keys, values, factor=1)
    np.testing.assert_allclose(np.asarray(V), np.asarray(V_ref), rtol=1e-3, atol=1e-3)
    assert V.shape == (B, L, H, D) and attn is None
    print("KERNEL_OK")
</pallas_src>

<mosaic_0001>
module attributes {stable_mosaic.version = 11 : i64} {
  func.func @_corr_gram_kernel(%arg0: i32, %arg1: i32, %arg2: memref<1x128x128xf32, #tpu.memory_space<vmem>>, %arg3: memref<1x128x128xf32, #tpu.memory_space<vmem>>, %arg4: memref<1x1x128xf32, #tpu.memory_space<vmem>>, %arg5: memref<128x128xf32, #tpu.memory_space<vmem>>) attributes {dimension_semantics = [#tpu.dimension_semantics<parallel>, #tpu.dimension_semantics<arbitrary>], iteration_bounds = array<i64: 2, 2>, scalar_prefetch = 0 : i64, scratch_operands = 1 : i64, tpu.core_type = #tpu.core_type<tc>, window_params = [{transform_indices = @transform_0, window_bounds = array<i64: 1, 128, 128>}, {transform_indices = @transform_1, window_bounds = array<i64: 1, 128, 128>}, {transform_indices = @transform_2, window_bounds = array<i64: 1, 1, 128>}]} {
    %c0_i32 = arith.constant 0 : i32
    %0 = arith.cmpi eq, %arg1, %c0_i32 : i32
    %1 = arith.extui %0 : i1 to i32
    %c0_i32_0 = arith.constant 0 : i32
    %2 = arith.cmpi ne, %1, %c0_i32_0 : i32
    scf.if %2 {
      %cst_11 = arith.constant 0.000000e+00 : f32
      %14 = vector.broadcast %cst_11 : f32 to vector<128x128xf32>
      %c0_12 = arith.constant 0 : index
      %c0_13 = arith.constant 0 : index
      %15 = vector.load %arg5[%c0_12, %c0_13] : memref<128x128xf32, #tpu.memory_space<vmem>>, vector<128x128xf32>
      tpu.vector_store %arg5[%c0_12, %c0_13], %14 {strides = array<i32>} : memref<128x128xf32, #tpu.memory_space<vmem>>, vector<128x128xf32>,
    } else {
    }
    %c0 = arith.constant 0 : index
    %c0_1 = arith.constant 0 : index
    %c0_2 = arith.constant 0 : index
    %3 = vector.load %arg2[%c0, %c0_1, %c0_2] : memref<1x128x128xf32, #tpu.memory_space<vmem>>, vector<1x128x128xf32>
    %4 = vector.shape_cast %3 : vector<1x128x128xf32> to vector<128x128xf32>
    %c0_3 = arith.constant 0 : index
    %c0_4 = arith.constant 0 : index
    %c0_5 = arith.constant 0 : index
    %5 = vector.load %arg3[%c0_3, %c0_4, %c0_5] : memref<1x128x128xf32, #tpu.memory_space<vmem>>, vector<1x128x128xf32>
    %6 = vector.shape_cast %5 : vector<1x128x128xf32> to vector<128x128xf32>
    %c0_6 = arith.constant 0 : index
    %c0_7 = arith.constant 0 : index
    %7 = vector.load %arg5[%c0_6, %c0_7] : memref<128x128xf32, #tpu.memory_space<vmem>>, vector<128x128xf32>
    %cst = arith.constant dense<0.000000e+00> : vector<128x128xf32>
    %8 = tpu.matmul %4, %6, %cst {dimension_numbers = #tpu.dot_dimension_numbers<[1], [1], [0], [0], [0, 0, 1, 0], [], []>} : vector<128x128xf32>, vector<128x128xf32>, vector<128x128xf32> -> vector<128x128xf32>
    %9 = arith.addf %7, %8 : vector<128x128xf32>
    %c0_8 = arith.constant 0 : index
    %c0_9 = arith.constant 0 : index
    %10 = vector.load %arg5[%c0_8, %c0_9] : memref<128x128xf32, #tpu.memory_space<vmem>>, vector<128x128xf32>
    tpu.vector_store %arg5[%c0_8, %c0_9], %9 {strides = array<i32>} : memref<128x128xf32, #tpu.memory_space<vmem>>, vector<128x128xf32>,
    %c1_i32 = arith.constant 1 : i32
    %11 = arith.cmpi eq, %arg1, %c1_i32 : i32
    %12 = arith.extui %11 : i1 to i32
    %c0_i32_10 = arith.constant 0 : i32
    %13 = arith.cmpi ne, %12, %c0_i32_10 : i32
    scf.if %13 {
      %c0_11 = arith.constant 0 : index
      %c0_12 = arith.constant 0 : index
      %14 = vector.load %arg5[%c0_11, %c0_12] : memref<128x128xf32, #tpu.memory_space<vmem>>, vector<128x128xf32>
      %15 = tpu.iota {dimensions = array<i32: 0>} : vector<128x128xi32>
      %c1_i32_13 = arith.constant 1 : i32
      %16 = vector.broadcast %c1_i32_13 : i32 to vector<128x128xi32>
      %17 = arith.andi %15, %16 : vector<128x128xi32>
      %c0_i32_14 = arith.constant 0 : i32
      %18 = vector.broadcast %c0_i32_14 : i32 to vector<128x128xi32>
      %19 = arith.cmpi ne, %17, %18 : vector<128x128xi32>
      %c127_i32 = arith.constant 127 : i32
      %20 = tpu.dynamic_rotate %14 by %c127_i32 dim 1 : vector<128x128xf32>, i32 -> vector<128x128xf32>
      %21 = arith.select %19, %20, %14 : vector<128x128xi1>, vector<128x128xf32>
      %c2_i32 = arith.constant 2 : i32
      %22 = vector.broadcast %c2_i32 : i32 to vector<128x128xi32>
      %23 = arith.andi %15, %22 : vector<128x128xi32>
      %c0_i32_15 = arith.constant 0 : i32
      %24 = vector.broadcast %c0_i32_15 : i32 to vector<128x128xi32>
      %25 = arith.cmpi ne, %23, %24 : vector<128x128xi32>
      %c126_i32 = arith.constant 126 : i32
      %26 = tpu.dynamic_rotate %21 by %c126_i32 dim 1 : vector<128x128xf32>, i32 -> vector<128x128xf32>
      %27 = arith.select %25, %26, %21 : vector<128x128xi1>, vector<128x128xf32>
      %c4_i32 = arith.constant 4 : i32
      %28 = vector.broadcast %c4_i32 : i32 to vector<128x128xi32>
      %29 = arith.andi %15, %28 : vector<128x128xi32>
      %c0_i32_16 = arith.constant 0 : i32
      %30 = vector.broadcast %c0_i32_16 : i32 to vector<128x128xi32>
      %31 = arith.cmpi ne, %29, %30 : vector<128x128xi32>
      %c124_i32 = arith.constant 124 : i32
      %32 = tpu.dynamic_rotate %27 by %c124_i32 dim 1 : vector<128x128xf32>, i32 -> vector<128x128xf32>
      %33 = arith.select %31, %32, %27 : vector<128x128xi1>, vector<128x128xf32>
      %c8_i32 = arith.constant 8 : i32
      %34 = vector.broadcast %c8_i32 : i32 to vector<128x128xi32>
      %35 = arith.andi %15, %34 : vector<128x128xi32>
      %c0_i32_17 = arith.constant 0 : i32
      %36 = vector.broadcast %c0_i32_17 : i32 to vector<128x128xi32>
      %37 = arith.cmpi ne, %35, %36 : vector<128x128xi32>
      %c120_i32 = arith.constant 120 : i32
      %38 = tpu.dynamic_rotate %33 by %c120_i32 dim 1 : vector<128x128xf32>, i32 -> vector<128x128xf32>
      %39 = arith.select %37, %38, %33 : vector<128x128xi1>, vector<128x128xf32>
      %c16_i32 = arith.constant 16 : i32
      %40 = vector.broadcast %c16_i32 : i32 to vector<128x128xi32>
      %41 = arith.andi %15, %40 : vector<128x128xi32>
      %c0_i32_18 = arith.constant 0 : i32
      %42 = vector.broadcast %c0_i32_18 : i32 to vector<128x128xi32>
      %43 = arith.cmpi ne, %41, %42 : vector<128x128xi32>
      %c112_i32 = arith.constant 112 : i32
      %44 = tpu.dynamic_rotate %39 by %c112_i32 dim 1 : vector<128x128xf32>, i32 -> vector<128x128xf32>
      %45 = arith.select %43, %44, %39 : vector<128x128xi1>, vector<128x128xf32>
      %c32_i32 = arith.constant 32 : i32
      %46 = vector.broadcast %c32_i32 : i32 to vector<128x128xi32>
      %47 = arith.andi %15, %46 : vector<128x128xi32>
      %c0_i32_19 = arith.constant 0 : i32
      %48 = vector.broadcast %c0_i32_19 : i32 to vector<128x128xi32>
      %49 = arith.cmpi ne, %47, %48 : vector<128x128xi32>
      %c96_i32 = arith.constant 96 : i32
      %50 = tpu.dynamic_rotate %45 by %c96_i32 dim 1 : vector<128x128xf32>, i32 -> vector<128x128xf32>
      %51 = arith.select %49, %50, %45 : vector<128x128xi1>, vector<128x128xf32>
      %c64_i32 = arith.constant 64 : i32
      %52 = vector.broadcast %c64_i32 : i32 to vector<128x128xi32>
      %53 = arith.andi %15, %52 : vector<128x128xi32>
      %c0_i32_20 = arith.constant 0 : i32
      %54 = vector.broadcast %c0_i32_20 : i32 to vector<128x128xi32>
      %55 = arith.cmpi ne, %53, %54 : vector<128x128xi32>
      %c64_i32_21 = arith.constant 64 : i32
      %56 = tpu.dynamic_rotate %51 by %c64_i32_21 dim 1 : vector<128x128xf32>, i32 -> vector<128x128xf32>
      %57 = arith.select %55, %56, %51 : vector<128x128xi1>, vector<128x128xf32>
      %cst_22 = arith.constant dense<0.000000e+00> : vector<128xf32>
      %58 = vector.multi_reduction <add>, %57, %cst_22 [0] : vector<128x128xf32> to vector<128xf32>
      %59 = vector.shape_cast %58 : vector<128xf32> to vector<1x128xf32>
      %cst_23 = arith.constant 3.906250e-03 : f32
      %60 = vector.broadcast %cst_23 : f32 to vector<1x128xf32>
      %61 = arith.mulf %59, %60 : vector<1x128xf32>
      %62 = vector.shape_cast %61 : vector<1x128xf32> to vector<1x1x128xf32>
      %c0_24 = arith.constant 0 : index
      %c0_25 = arith.constant 0 : index
      %c0_26 = arith.constant 0 : index
      %63 = vector.load %arg4[%c0_24, %c0_25, %c0_26] : memref<1x1x128xf32, #tpu.memory_space<vmem>>, vector<1x1x128xf32>
      tpu.vector_store %arg4[%c0_24, %c0_25, %c0_26], %62 {strides = array<i32>} : memref<1x1x128xf32, #tpu.memory_space<vmem>>, vector<1x1x128xf32>,
    } else {
    }
    return
  }
  func.func @transform_0(%arg0: i32, %arg1: i32) -> (i32, i32, i32) {
    %c0_i32 = arith.constant 0 : i32
    %c0_i32_0 = arith.constant 0 : i32
    return %arg0, %c0_i32, %arg1 : i32, i32, i32
  }
  func.func @transform_1(%arg0: i32, %arg1: i32) -> (i32, i32, i32) {
    %c0_i32 = arith.constant 0 : i32
    %c0_i32_0 = arith.constant 0 : i32
    return %arg0, %c0_i32, %arg1 : i32, i32, i32
  }
  func.func @transform_2(%arg0: i32, %arg1: i32) -> (i32, i32, i32) {
    %c0_i32 = arith.constant 0 : i32
    %c0_i32_0 = arith.constant 0 : i32
    %c0_i32_1 = arith.constant 0 : i32
    return %arg0, %c0_i32, %c0_i32_0 : i32, i32, i32
  }
}

</mosaic_0001>

<llo_original>
// kernel: tpu_custom_call.1
$region0: #{tpu_custom_call.1}
  #allocation0 [shape = 'u32[]', space=smem, size = 0x4, offset = 0x4, fixed_abs, tag = 'smem constant byte address 0x4 - core index']
  #allocation1 [shape = 'u32[144,128]{1,0:T(1,128)}', space=vmem, size = 0x12000, scoped, tag = 'internal scratch']
  #allocation2 [shape = 'f32[128,128]{1,0:T(8,128)}', space=vmem, size = 0x10000, scoped, tag = 'scratch operand']
  %s0 = inlined_call_operand.hbm [shape: f32[2,128,256], index: 0, kind: input, shape index: {}]
  %s1 = inlined_call_operand.hbm [shape: f32[2,128,256], index: 1, kind: input, shape index: {}]
  %s2 = inlined_call_operand.hbm [shape: f32[2,1,128], index: 2, kind: output, shape index: {}]
  %s3 = sld [smem:[#allocation0]]
  $region57: #{tpu_custom_call.1} parent=0
    _
  %s5 = ssub.s32 1, %s3
  %s6 = scalar_select 0, %s5, %s3
  $region1: #{tpu_custom_call.1} parent=0
    #allocation3 [shape = 'u8[131072]{0}', space=vmem, size = 0x20000, scoped, tag = 'input window, operand 0']
    #allocation4 [shape = 's32[2]{0}', space=sflag, size = 0x8, scoped, tag = 'scoped memory for tpu_custom_call.1']
    #allocation5 [shape = 's32[2]{0}', space=sflag, size = 0x8, scoped, tag = 'scoped memory for tpu_custom_call.1']
    #allocation6 [shape = 'u8[131072]{0}', space=vmem, size = 0x20000, scoped, tag = 'input window, operand 1']
    #allocation7 [shape = 's32[2]{0}', space=sflag, size = 0x8, scoped, tag = 'scoped memory for tpu_custom_call.1']
    #allocation8 [shape = 'u8[1024]{0}', space=vmem, size = 0x400, scoped, tag = 'output window, operand 0']
    %7 = vsyncpa [#allocation4], 0
    %s8 = scalar_lea.sflag [#allocation4], 1
    %9 = vsyncpa %s8, 0
    %10 = vsyncpa [#allocation7], 0
    %s11 = scalar_lea.sflag [#allocation7], 1
    %12 = vsyncpa %s11, 0
    %13 = vsyncpa [#allocation5], 0
    %s14 = scalar_lea.sflag [#allocation5], 1
    %15 = vsyncpa %s14, 0
    loop: start=0, step=1, limit=6
    $region2: #{tpu_custom_call.1} parent=1 // loop_pre_header
      _
    $region3: #{tpu_custom_call.1} parent=1 // loop_header
      %s17 = sphi 0, %s21
      %p18 = scmp.ge.s32.totalorder %s17, 6
      %s24 = sphi 0, %s36
      %s25 = sphi 0, %s32
      %s26 = sphi 0, %s24
      %s27 = sphi 0, %s25
      %s28 = sphi 0, %s26
      %s29 = sphi 0, %s27
      %s41 = sphi 0, %s43
      %s44 = sphi 0, %s41
      %s45 = sphi 0, %s44
      %s61 = sphi 0, %s45
      %s69 = sphi 0, %s71
      %s72 = sphi 0, %s69
      %s73 = sphi 0, %s72
      %s89 = sphi 0, %s73
      %s95 = sphi 0, %s97
      %s98 = sphi 0, %s95
      %s99 = sphi 0, %s98
      %s115 = sphi 0, %s99
    $region4: #{tpu_custom_call.1} parent=1 // loop_header_branch
      %20 = sbr.rel (%p18) target = $region8
    $region5: #{tpu_custom_call.1} parent=1 // loop_body
      %s22 = ssub.s32 %s17, 1
      %s23 = ssub.s32 %s17, 2
      %s30 = sadd.s32 1, %s25
      %p31 = scmp.ge.s32.totalorder %s30, 2
      %s32 = scalar_select %p31, 0, %s30
      %s33 = sadd.s32 1, %s24
      %s34 = scalar_select %p31, %s33, %s24
      %p35 = scmp.ge.s32.totalorder %s34, 2
      %s36 = scalar_select %p35, 0, %s34
      %s37 = ssub.s32 %s24, %s36
      %s38 = ssub.s32 %s25, %s32
      %s39 = sor.u32 %s37, %s38
      %p40 = scmp.eq.s32.totalorder %s39, 0
      %s42 = sadd.s32 %s41, 1
      %s43 = scalar_select %p40, %s41, %s42
      %p46 = pneg %p40
      %p47 = scmp.eq.s32.totalorder %s17, 3
      %p48 = por %p46, %p47
      %p49 = scmp.ne.s32.totalorder %s41, %s44
      %p50 = scmp.eq.s32.totalorder %s17, 0
      %p51 = por %p49, %p50
      %p52 = scmp.ne.s32.totalorder %s41, %s44
      %p53 = scmp.eq.s32.totalorder %s22, 3
      %p54 = por %p52, %p53
      %p55 = scmp.ne.s32.totalorder %s44, %s45
      %p56 = scmp.eq.s32.totalorder %s22, 0
      %p57 = por %p55, %p56
      %p58 = scmp.ne.s32.totalorder %s44, %s45
      %p59 = scmp.eq.s32.totalorder %s23, 3
      %p60 = por %p58, %p59
      %p62 = scmp.ne.s32.totalorder %s45, %s61
      %p63 = scmp.eq.s32.totalorder %s23, 0
      %p64 = por %p62, %p63
      %s65 = ssub.s32 %s24, %s36
      %s66 = ssub.s32 %s25, %s32
      %s67 = sor.u32 %s65, %s66
      %p68 = scmp.eq.s32.totalorder %s67, 0
      %s70 = sadd.s32 %s69, 1
      %s71 = scalar_select %p68, %s69, %s70
      %p74 = pneg %p68
      %p75 = scmp.eq.s32.totalorder %s17, 3
      %p76 = por %p74, %p75
      %p77 = scmp.ne.s32.totalorder %s69, %s72
      %p78 = scmp.eq.s32.totalorder %s17, 0
      %p79 = por %p77, %p78
      %p80 = scmp.ne.s32.totalorder %s69, %s72
      %p81 = scmp.eq.s32.totalorder %s22, 3
      %p82 = por %p80, %p81
      %p83 = scmp.ne.s32.totalorder %s72, %s73
      %p84 = scmp.eq.s32.totalorder %s22, 0
      %p85 = por %p83, %p84
      %p86 = scmp.ne.s32.totalorder %s72, %s73
      %p87 = scmp.eq.s32.totalorder %s23, 3
      %p88 = por %p86, %p87
      %p90 = scmp.ne.s32.totalorder %s73, %s89
      %p91 = scmp.eq.s32.totalorder %s23, 0
      %p92 = por %p90, %p91
      %s93 = ssub.s32 %s24, %s36
      %p94 = scmp.eq.s32.totalorder %s93, 0
      %s96 = sadd.s32 %s95, 1
      %s97 = scalar_select %p94, %s95, %s96
      %p100 = pneg %p94
      %p101 = scmp.eq.s32.totalorder %s17, 3
      %p102 = por %p100, %p101
      %p103 = scmp.ne.s32.totalorder %s95, %s98
      %p104 = scmp.eq.s32.totalorder %s17, 0
      %p105 = por %p103, %p104
      %p106 = scmp.ne.s32.totalorder %s95, %s98
      %p107 = scmp.eq.s32.totalorder %s22, 3
      %p108 = por %p106, %p107
      %p109 = scmp.ne.s32.totalorder %s98, %s99
      %p110 = scmp.eq.s32.totalorder %s22, 0
      %p111 = por %p109, %p110
      %p112 = scmp.ne.s32.totalorder %s98, %s99
      %p113 = scmp.eq.s32.totalorder %s23, 3
      %p114 = por %p112, %p113
      %p116 = scmp.ne.s32.totalorder %s99, %s115
      %p117 = scmp.eq.s32.totalorder %s23, 0
      %p118 = por %p116, %p117
      %p119 = scmp.le.s32.totalorder 1, %s17
      %p120 = scmp.lt.s32.totalorder %s17, 5
      %p121 = pnand %p119, %p120
      %p122 = pneg %p121
      // Predicated region
      $region9: #{tpu_custom_call.1} parent=5 // pred_check
        _
      $region10: #{tpu_custom_call.1} parent=5 // pred_check_branch
        %124 = sbr.rel (%p121) target = $region12
      $region11: #{tpu_custom_call.1} parent=5 // pred_region
        %s125 = ssub.s32 %s17, 1
      $region12: #{tpu_custom_call.1} parent=5 // pred_fallthru
        _
      %p126 = scmp.lt.s32.totalorder %s17, 4
      // Predicated region
      $region13: #{tpu_custom_call.1} parent=5 // pred_check
        %p127 = pneg %p126
      $region14: #{tpu_custom_call.1} parent=5 // pred_check_branch
        %129 = sbr.rel (%p127) target = $region16
      $region15: #{tpu_custom_call.1} parent=5 // pred_region
        // Predicated region
        $region17: #{tpu_custom_call.1} parent=15 // pred_check
          %p130 = pneg %p51
        $region18: #{tpu_custom_call.1} parent=15 // pred_check_branch
          %132 = sbr.rel (%p130) target = $region20
        $region19: #{tpu_custom_call.1} parent=15 // pred_region
          %s133 = sand.u32 %s41, 1
          %s134 = scalar_lea.sflag [#allocation4], %s133
          %s135 = sand.u32 %s41, 1
          %s136 = smul.addr %s135, 128
          %s137 = scalar_lea.vmem [#allocation3], %s136
          %s139 = ssub.s32 2048, 2048
          %140 = vsyncadd %s134, %s139
          %s141 = smul.addr %s24, 32
          %s142 = sadd.s32 %s25, %s141
          %s143 = smul.addr %s142, 128
          %s144 = scalar_lea.hbm %s0, %s143
          %s145 = sshll.u32 %s137, 4
          %s146 = int_to_ptr.vmem [resolvable:$true] %s145
          %151 = dma.hbm_to_vmem [thread:$0]  %s144, 2048, %s146, %s134, 256, 128, 8
        $region20: #{tpu_custom_call.1} parent=15 // pred_fallthru
          _
        // Predicated region
        $region21: #{tpu_custom_call.1} parent=15 // pred_check
          %p152 = pneg %p79
        $region22: #{tpu_custom_call.1} parent=15 // pred_check_branch
          %154 = sbr.rel (%p152) target = $region24
        $region23: #{tpu_custom_call.1} parent=15 // pred_region
          %s155 = sand.u32 %s69, 1
          %s156 = scalar_lea.sflag [#allocation7], %s155
          %s157 = sand.u32 %s69, 1
          %s158 = smul.addr %s157, 128
          %s159 = scalar_lea.vmem [#allocation6], %s158
          %s161 = ssub.s32 2048, 2048
          %162 = vsyncadd %s156, %s161
          %s163 = smul.addr %s24, 32
          %s164 = sadd.s32 %s25, %s163
          %s165 = smul.addr %s164, 128
          %s166 = scalar_lea.hbm %s1, %s165
          %s167 = sshll.u32 %s159, 4
          %s168 = int_to_ptr.vmem [resolvable:$true] %s167
          %173 = dma.hbm_to_vmem [thread:$0]  %s166, 2048, %s168, %s156, 256, 128, 8
        $region24: #{tpu_custom_call.1} parent=15 // pred_fallthru
          _
      $region16: #{tpu_custom_call.1} parent=5 // pred_fallthru
        _
      %p174 = scmp.le.s32.totalorder 1, %s17
      %p175 = scmp.lt.s32.totalorder %s17, 5
      %p176 = pnand %p174, %p175
      %p177 = pneg %p176
      // Predicated region
      $region25: #{tpu_custom_call.1} parent=5 // pred_check
        _
      $region26: #{tpu_custom_call.1} parent=5 // pred_check_branch
        %179 = sbr.rel (%p176) target = $region28
      $region27: #{tpu_custom_call.1} parent=5 // pred_region
        %s180 = ssub.s32 %s17, 1
        %s181 = sand.u32 %s44, 1
        %s182 = scalar_lea.sflag [#allocation4], %s181
        %s183 = sand.u32 %s44, 1
        %s184 = smul.addr %s183, 128
        %s185 = scalar_lea.vmem [#allocation3], %s184
        // Predicated region
        $region29: #{tpu_custom_call.1} parent=27 // pred_check
          %p186 = pneg %p57
        $region30: #{tpu_custom_call.1} parent=27 // pred_check_branch
          %188 = sbr.rel (%p186) target = $region32
        $region31: #{tpu_custom_call.1} parent=27 // pred_region
          %189 = dma.done %s182, 2048
        $region32: #{tpu_custom_call.1} parent=27 // pred_fallthru
          _
        %s190 = sand.u32 %s72, 1
        %s191 = scalar_lea.sflag [#allocation7], %s190
        %s192 = sand.u32 %s72, 1
        %s193 = smul.addr %s192, 128
        %s194 = scalar_lea.vmem [#allocation6], %s193
        // Predicated region
        $region33: #{tpu_custom_call.1} parent=27 // pred_check
          %p195 = pneg %p85
        $region34: #{tpu_custom_call.1} parent=27 // pred_check_branch
          %197 = sbr.rel (%p195) target = $region36
        $region35: #{tpu_custom_call.1} parent=27 // pred_region
          %198 = dma.done %s191, 2048
        $region36: #{tpu_custom_call.1} parent=27 // pred_fallthru
          _
        %s199 = sand.u32 %s44, 1
        %s200 = scalar_lea.sflag [#allocation4], %s199
        %s201 = sand.u32 %s44, 1
        %s202 = smul.addr %s201, 128
        %s203 = scalar_lea.vmem [#allocation3], %s202
        %p204 = pneg %p57
        %p205 = pneg %p54
        %s206 = sand.u32 %s72, 1
        %s207 = scalar_lea.sflag [#allocation7], %s206
        %s208 = sand.u32 %s72, 1
        %s209 = smul.addr %s208, 128
        %s210 = scalar_lea.vmem [#allocation6], %s209
        %p211 = pneg %p85
        %p212 = pneg %p82
        %p213 = pneg %p111
        %p214 = pneg %p108
        %s215 = sand.u32 %s98, 1
        %s216 = scalar_lea.sflag [#allocation5], %s215
        %s217 = sand.u32 %s98, 1
        %s218 = scalar_lea.vmem [#allocation8], %s217
        %p219 = scmp.eq.s32.totalorder %s27, 0
        // Predicated region
        $region37: #{tpu_custom_call.1} parent=27 // pred_check
          %p220 = pneg %p219
        $region38: #{tpu_custom_call.1} parent=27 // pred_check_branch
          %222 = sbr.rel (%p220) target = $region40
        $region39: #{tpu_custom_call.1} parent=27 // pred_region
          %223 = vst [vmem:[#allocation2] sm:$0xff] 0.0
          %224 = vst [vmem:[#allocation2 + $0x8] sm:$0xff] 0.0
          %225 = vst [vmem:[#allocation2 + $0x10] sm:$0xff] 0.0
          %226 = vst [vmem:[#allocation2 + $0x18] sm:$0xff] 0.0
          %227 = vst [vmem:[#allocation2 + $0x20] sm:$0xff] 0.0
          %228 = vst [vmem:[#allocation2 + $0x28] sm:$0xff] 0.0
          %229 = vst [vmem:[#allocation2 + $0x30] sm:$0xff] 0.0
          %230 = vst [vmem:[#allocation2 + $0x38] sm:$0xff] 0.0
          %231 = vst [vmem:[#allocation2 + $0x40] sm:$0xff] 0.0
          %232 = vst [vmem:[#allocation2 + $0x48] sm:$0xff] 0.0
          %233 = vst [vmem:[#allocation2 + $0x50] sm:$0xff] 0.0
          %234 = vst [vmem:[#allocation2 + $0x58] sm:$0xff] 0.0
          %235 = vst [vmem:[#allocation2 + $0x60] sm:$0xff] 0.0
          %236 = vst [vmem:[#allocation2 + $0x68] sm:$0xff] 0.0
          %237 = vst [vmem:[#allocation2 + $0x70] sm:$0xff] 0.0
          %238 = vst [vmem:[#allocation2 + $0x78] sm:$0xff] 0.0
        $region40: #{tpu_custom_call.1} parent=27 // pred_fallthru
          _
        %v239 = vld [vmem:[%s185] sm:$0xff]
        %v240 = vld [vmem:[%s185 + $0x8] sm:$0xff]
        %v241 = vld [vmem:[%s185 + $0x10] sm:$0xff]
        %v242 = vld [vmem:[%s185 + $0x18] sm:$0xff]
        %v243 = vld [vmem:[%s185 + $0x20] sm:$0xff]
        %v244 = vld [vmem:[%s185 + $0x28] sm:$0xff]
        %v245 = vld [vmem:[%s185 + $0x30] sm:$0xff]
        %v246 = vld [vmem:[%s185 + $0x38] sm:$0xff]
        %v247 = vld [vmem:[%s185 + $0x40] sm:$0xff]
        %v248 = vld [vmem:[%s185 + $0x48] sm:$0xff]
        %v249 = vld [vmem:[%s185 + $0x50] sm:$0xff]
        %v250 = vld [vmem:[%s185 + $0x58] sm:$0xff]
        %v251 = vld [vmem:[%s185 + $0x60] sm:$0xff]
        %v252 = vld [vmem:[%s185 + $0x68] sm:$0xff]
        %v253 = vld [vmem:[%s185 + $0x70] sm:$0xff]
        %v254 = vld [vmem:[%s185 + $0x78] sm:$0xff]
        %v255 = vld [vmem:[%s194] sm:$0xff]
        %v256 = vld [vmem:[%s194 + $0x8] sm:$0xff]
        %v257 = vld [vmem:[%s194 + $0x10] sm:$0xff]
        %v258 = vld [vmem:[%s194 + $0x18] sm:$0xff]
        %v259 = vld [vmem:[%s194 + $0x20] sm:$0xff]
        %v260 = vld [vmem:[%s194 + $0x28] sm:$0xff]
        %v261 = vld [vmem:[%s194 + $0x30] sm:$0xff]
        %v262 = vld [vmem:[%s194 + $0x38] sm:$0xff]
        %v263 = vld [vmem:[%s194 + $0x40] sm:$0xff]
        %v264 = vld [vmem:[%s194 + $0x48] sm:$0xff]
        %v265 = vld [vmem:[%s194 + $0x50] sm:$0xff]
        %v266 = vld [vmem:[%s194 + $0x58] sm:$0xff]
        %v267 = vld [vmem:[%s194 + $0x60] sm:$0xff]
        %v268 = vld [vmem:[%s194 + $0x68] sm:$0xff]
        %v269 = vld [vmem:[%s194 + $0x70] sm:$0xff]
        %v270 = vld [vmem:[%s194 + $0x78] sm:$0xff]
        %v271 = vld [vmem:[#allocation2] sm:$0xff]
        %v272 = vld [vmem:[#allocation2 + $0x8] sm:$0xff]
        %v273 = vld [vmem:[#allocation2 + $0x10] sm:$0xff]
        %v274 = vld [vmem:[#allocation2 + $0x18] sm:$0xff]
        %v275 = vld [vmem:[#allocation2 + $0x20] sm:$0xff]
        %v276 = vld [vmem:[#allocation2 + $0x28] sm:$0xff]
        %v277 = vld [vmem:[#allocation2 + $0x30] sm:$0xff]
        %v278 = vld [vmem:[#allocation2 + $0x38] sm:$0xff]
        %v279 = vld [vmem:[#allocation2 + $0x40] sm:$0xff]
        %v280 = vld [vmem:[#allocation2 + $0x48] sm:$0xff]
        %v281 = vld [vmem:[#allocation2 + $0x50] sm:$0xff]
        %v282 = vld [vmem:[#allocation2 + $0x58] sm:$0xff]
        %v283 = vld [vmem:[#allocation2 + $0x60] sm:$0xff]
        %v284 = vld [vmem:[#allocation2 + $0x68] sm:$0xff]
        %v285 = vld [vmem:[#allocation2 + $0x70] sm:$0xff]
        %v286 = vld [vmem:[#allocation2 + $0x78] sm:$0xff]
        %287 = vmatprep.subr.mxu0 0.0
        %288 = vmatpush1.xpose.msra.mxu0 %v255
        %289 = vmatprep.subr.mxu0 0.0
        %290 = vmatpush1.xpose.msra.mxu0 %v256
        %291 = vmatprep.subr.mxu0 0.0
        %292 = vmatpush1.xpose.msra.mxu0 %v257
        %293 = vmatprep.subr.mxu0 0.0
        %294 = vmatpush1.xpose.msra.mxu0 %v258
        %295 = vmatprep.subr.mxu0 0.0
        %296 = vmatpush1.xpose.msra.mxu0 %v259
        %297 = vmatprep.subr.mxu0 0.0
        %298 = vmatpush1.xpose.msra.mxu0 %v260
        %299 = vmatprep.subr.mxu0 0.0
        %300 = vmatpush1.xpose.msra.mxu0 %v261
        %301 = vmatprep.subr.mxu0 0.0
        %302 = vmatpush1.xpose.msra.mxu0 %v262
        %303 = vmatprep.subr.mxu0 0.0
        %304 = vmatpush1.xpose.msra.mxu0 %v263
        %305 = vmatprep.subr.mxu0 0.0
        %306 = vmatpush1.xpose.msra.mxu0 %v264
        %307 = vmatprep.subr.mxu0 0.0
        %308 = vmatpush1.xpose.msra.mxu0 %v265
        %309 = vmatprep.subr.mxu0 0.0
        %310 = vmatpush1.xpose.msra.mxu0 %v266
        %311 = vmatprep.subr.mxu0 0.0
        %312 = vmatpush1.xpose.msra.mxu0 %v267
        %313 = vmatprep.subr.mxu0 0.0
        %314 = vmatpush1.xpose.msra.mxu0 %v268
        %315 = vmatprep.subr.mxu0 0.0
        %316 = vmatpush1.xpose.msra.mxu0 %v269
        %317 = vmatprep.subr.mxu0 0.0
        %318 = vmatpush1.xpose.msra.mxu0 %v270
        %319 = vmatprep.subr.mxu0 0.0
        %320 = vmatpush1.xpose.msra.mxu0 0.0
        %321 = vmatprep.subr.mxu0 0.0
        %322 = vmatpush1.xpose.msra.mxu0 0.0
        %323 = vmatprep.subr.mxu0 0.0
        %324 = vmatpush1.xpose.msra.mxu0 0.0
        %325 = vmatprep.subr.mxu0 0.0
        %326 = vmatpush1.xpose.msra.mxu0 0.0
        %327 = vmatprep.subr.mxu0 0.0
        %328 = vmatpush1.xpose.msra.mxu0 0.0
        %329 = vmatprep.subr.mxu0 0.0
        %330 = vmatpush1.xpose.msra.mxu0 0.0
        %331 = vmatprep.subr.mxu0 0.0
        %332 = vmatpush1.xpose.msra.mxu0 0.0
        %333 = vmatprep.subr.mxu0 0.0
        %334 = vmatpush1.xpose.msra.mxu0 0.0
        %335 = vmatprep.subr.mxu0 0.0
        %336 = vmatpush1.xpose.msra.mxu0 0.0
        %337 = vmatprep.subr.mxu0 0.0
        %338 = vmatpush1.xpose.msra.mxu0 0.0
        %339 = vmatprep.subr.mxu0 0.0
        %340 = vmatpush1.xpose.msra.mxu0 0.0
        %341 = vmatprep.subr.mxu0 0.0
        %342 = vmatpush1.xpose.msra.mxu0 0.0
        %343 = vmatprep.subr.mxu0 0.0
        %344 = vmatpush1.xpose.msra.mxu0 0.0
        %345 = vmatprep.subr.mxu0 0.0
        %346 = vmatpush1.xpose.msra.mxu0 0.0
        %347 = vmatprep.subr.mxu0 0.0
        %348 = vmatpush1.xpose.msra.mxu0 0.0
        %349 = vmatprep.subr.mxu0 0.0
        %350 = vmatpush1.xpose.msra.mxu0 0.0
        %351 = vmatprep.mubr.f32.mxu0 0.0
        %352 = vmatmul.mubr.f32.gmra.mrb[0].mxu0 %v239
        %v353 = vpop.f32.mrb[0].mxu0
        %v354 = vadd.f32 0.0, %v353
        %v355 = vpop.f32.mrb[0].mxu0
        %356 = vmatprep.mubr.f32.mxu0 0.0
        %357 = vmatmul.mubr.f32.gmra.mrb[0].mxu0 %v240
        %v358 = vpop.f32.mrb[0].mxu0
        %v359 = vadd.f32 0.0, %v358
        %v360 = vpop.f32.mrb[0].mxu0
        %361 = vmatprep.mubr.f32.mxu0 0.0
        %362 = vmatmul.mubr.f32.gmra.mrb[0].mxu0 %v241
        %v363 = vpop.f32.mrb[0].mxu0
        %v364 = vadd.f32 0.0, %v363
        %v365 = vpop.f32.mrb[0].mxu0
        %366 = vmatprep.mubr.f32.mxu0 0.0
        %367 = vmatmul.mubr.f32.gmra.mrb[0].mxu0 %v242
        %v368 = vpop.f32.mrb[0].mxu0
        %v369 = vadd.f32 0.0, %v368
        %v370 = vpop.f32.mrb[0].mxu0
        %371 = vmatprep.mubr.f32.mxu0 0.0
        %372 = vmatmul.mubr.f32.gmra.mrb[0].mxu0 %v243
        %v373 = vpop.f32.mrb[0].mxu0
        %v374 = vadd.f32 0.0, %v373
        %v375 = vpop.f32.mrb[0].mxu0
        %376 = vmatprep.mubr.f32.mxu0 0.0
        %377 = vmatmul.mubr.f32.gmra.mrb[0].mxu0 %v244
        %v378 = vpop.f32.mrb[0].mxu0
        %v379 = vadd.f32 0.0, %v378
        %v380 = vpop.f32.mrb[0].mxu0
        %381 = vmatprep.mubr.f32.mxu0 0.0
        %382 = vmatmul.mubr.f32.gmra.mrb[0].mxu0 %v245
        %v383 = vpop.f32.mrb[0].mxu0
        %v384 = vadd.f32 0.0, %v383
        %v385 = vpop.f32.mrb[0].mxu0
        %386 = vmatprep.mubr.f32.mxu0 0.0
        %387 = vmatmul.mubr.f32.gmra.mrb[0].mxu0 %v246
        %v388 = vpop.f32.mrb[0].mxu0
        %v389 = vadd.f32 0.0, %v388
        %v390 = vpop.f32.mrb[0].mxu0
        %391 = vmatprep.mubr.f32.mxu0 0.0
        %392 = vmatmul.mubr.f32.gmra.mrb[0].mxu0 %v247
        %v393 = vpop.f32.mrb[0].mxu0
        %v394 = vadd.f32 0.0, %v393
        %v395 = vpop.f32.mrb[0].mxu0
        %396 = vmatprep.mubr.f32.mxu0 0.0
        %397 = vmatmul.mubr.f32.gmra.mrb[0].mxu0 %v248
        %v398 = vpop.f32.mrb[0].mxu0
        %v399 = vadd.f32 0.0, %v398
        %v400 = vpop.f32.mrb[0].mxu0
        %401 = vmatprep.mubr.f32.mxu0 0.0
        %402 = vmatmul.mubr.f32.gmra.mrb[0].mxu0 %v249
        %v403 = vpop.f32.mrb[0].mxu0
        %v404 = vadd.f32 0.0, %v403
        %v405 = vpop.f32.mrb[0].mxu0
        %406 = vmatprep.mubr.f32.mxu0 0.0
        %407 = vmatmul.mubr.f32.gmra.mrb[0].mxu0 %v250
        %v408 = vpop.f32.mrb[0].mxu0
        %v409 = vadd.f32 0.0, %v408
        %v410 = vpop.f32.mrb[0].mxu0
        %411 = vmatprep.mubr.f32.mxu0 0.0
        %412 = vmatmul.mubr.f32.gmra.mrb[0].mxu0 %v251
        %v413 = vpop.f32.mrb[0].mxu0
        %v414 = vadd.f32 0.0, %v413
        %v415 = vpop.f32.mrb[0].mxu0
        %416 = vmatprep.mubr.f32.mxu0 0.0
        %417 = vmatmul.mubr.f32.gmra.mrb[0].mxu0 %v252
        %v418 = vpop.f32.mrb[0].mxu0
        %v419 = vadd.f32 0.0, %v418
        %v420 = vpop.f32.mrb[0].mxu0
        %421 = vmatprep.mubr.f32.mxu0 0.0
        %422 = vmatmul.mubr.f32.gmra.mrb[0].mxu0 %v253
        %v423 = vpop.f32.mrb[0].mxu0
        %v424 = vadd.f32 0.0, %v423
        %v425 = vpop.f32.mrb[0].mxu0
        %426 = vmatprep.mubr.f32.mxu0 0.0
        %427 = vmatmul.mubr.f32.gmra.mrb[0].mxu0 %v254
        %v428 = vpop.f32.mrb[0].mxu0
        %v429 = vadd.f32 0.0, %v428
        %v430 = vpop.f32.mrb[0].mxu0
        %431 = vdwg.mxu0
        %v432 = vadd.f32 %v271, %v354
        %v433 = vadd.f32 %v272, %v359
        %v434 = vadd.f32 %v273, %v364
        %v435 = vadd.f32 %v274, %v369
        %v436 = vadd.f32 %v275, %v374
        %v437 = vadd.f32 %v276, %v379
        %v438 = vadd.f32 %v277, %v384
        %v439 = vadd.f32 %v278, %v389
        %v440 = vadd.f32 %v279, %v394
        %v441 = vadd.f32 %v280, %v399
        %v442 = vadd.f32 %v281, %v404
        %v443 = vadd.f32 %v282, %v409
        %v444 = vadd.f32 %v283, %v414
        %v445 = vadd.f32 %v284, %v419
        %v446 = vadd.f32 %v285, %v424
        %v447 = vadd.f32 %v286, %v429
        %448 = vst [vmem:[#allocation2] sm:$0xff] %v432
        %449 = vst [vmem:[#allocation2 + $0x8] sm:$0xff] %v433
        %450 = vst [vmem:[#allocation2 + $0x10] sm:$0xff] %v434
        %451 = vst [vmem:[#allocation2 + $0x18] sm:$0xff] %v435
        %452 = vst [vmem:[#allocation2 + $0x20] sm:$0xff] %v436
        %453 = vst [vmem:[#allocation2 + $0x28] sm:$0xff] %v437
        %454 = vst [vmem:[#allocation2 + $0x30] sm:$0xff] %v438
        %455 = vst [vmem:[#allocation2 + $0x38] sm:$0xff] %v439
        %456 = vst [vmem:[#allocation2 + $0x40] sm:$0xff] %v440
        %457 = vst [vmem:[#allocation2 + $0x48] sm:$0xff] %v441
        %458 = vst [vmem:[#allocation2 + $0x50] sm:$0xff] %v442
        %459 = vst [vmem:[#allocation2 + $0x58] sm:$0xff] %v443
        %460 = vst [vmem:[#allocation2 + $0x60] sm:$0xff] %v444
        %461 = vst [vmem:[#allocation2 + $0x68] sm:$0xff] %v445
        %462 = vst [vmem:[#allocation2 + $0x70] sm:$0xff] %v446
        %463 = vst [vmem:[#allocation2 + $0x78] sm:$0xff] %v447
        %p464 = scmp.eq.s32.totalorder %s27, 1
        // Predicated region
        $region41: #{tpu_custom_call.1} parent=27 // pred_check
          %p465 = pneg %p464
        $region42: #{tpu_custom_call.1} parent=27 // pred_check_branch
          %467 = sbr.rel (%p465) target = $region44
        $region43: #{tpu_custom_call.1} parent=27 // pred_region
          %v468 = vld [vmem:[#allocation2] sm:$0xff]
          %v469 = vld [vmem:[#allocation2 + $0x8] sm:$0xff]
          %v470 = vld [vmem:[#allocation2 + $0x10] sm:$0xff]
          %v471 = vld [vmem:[#allocation2 + $0x18] sm:$0xff]
          %v472 = vld [vmem:[#allocation2 + $0x20] sm:$0xff]
          %v473 = vld [vmem:[#allocation2 + $0x28] sm:$0xff]
          %v474 = vld [vmem:[#allocation2 + $0x30] sm:$0xff]
          %v475 = vld [vmem:[#allocation2 + $0x38] sm:$0xff]
          %v476 = vld [vmem:[#allocation2 + $0x40] sm:$0xff]
          %v477 = vld [vmem:[#allocation2 + $0x48] sm:$0xff]
          %v478 = vld [vmem:[#allocation2 + $0x50] sm:$0xff]
          %v479 = vld [vmem:[#allocation2 + $0x58] sm:$0xff]
          %v480 = vld [vmem:[#allocation2 + $0x60] sm:$0xff]
          %v481 = vld [vmem:[#allocation2 + $0x68] sm:$0xff]
          %v482 = vld [vmem:[#allocation2 + $0x70] sm:$0xff]
          %v483 = vld [vmem:[#allocation2 + $0x78] sm:$0xff]
          %v484 = vlaneseq
          %v485 = vshrl.u32 %v484, 7
          %v486 = vadd.s32 %v485, 8
          %v487 = vadd.s32 %v485, 16
          %v488 = vadd.s32 %v485, 24
          %v489 = vadd.s32 %v485, 32
          %v490 = vadd.s32 %v485, 40
          %v491 = vadd.s32 %v485, 48
          %v492 = vadd.s32 %v485, 56
          %v493 = vadd.s32 %v485, 64
          %v494 = vadd.s32 %v485, 72
          %v495 = vadd.s32 %v485, 80
          %v496 = vadd.s32 %v485, 88
          %v497 = vadd.s32 %v485, 96
          %v498 = vadd.s32 %v485, 104
          %v499 = vadd.s32 %v485, 112
          %v500 = vadd.s32 %v485, 120
          %v501 = vand.u32 %v485, 1
          %v502 = vand.u32 %v486, 1
          %v503 = vand.u32 %v487, 1
          %v504 = vand.u32 %v488, 1
          %v505 = vand.u32 %v489, 1
          %v506 = vand.u32 %v490, 1
          %v507 = vand.u32 %v491, 1
          %v508 = vand.u32 %v492, 1
          %v509 = vand.u32 %v493, 1
          %v510 = vand.u32 %v494, 1
          %v511 = vand.u32 %v495, 1
          %v512 = vand.u32 %v496, 1
          %v513 = vand.u32 %v497, 1
          %v514 = vand.u32 %v498, 1
          %v515 = vand.u32 %v499, 1
          %v516 = vand.u32 %v500, 1
          %vm517 = vcmp.ne.s32.totalorder %v501, 0
          %vm518 = vcmp.ne.s32.totalorder %v502, 0
          %vm519 = vcmp.ne.s32.totalorder %v503, 0
          %vm520 = vcmp.ne.s32.totalorder %v504, 0
          %vm521 = vcmp.ne.s32.totalorder %v505, 0
          %vm522 = vcmp.ne.s32.totalorder %v506, 0
          %vm523 = vcmp.ne.s32.totalorder %v507, 0
          %vm524 = vcmp.ne.s32.totalorder %v508, 0
          %vm525 = vcmp.ne.s32.totalorder %v509, 0
          %vm526 = vcmp.ne.s32.totalorder %v510, 0
          %vm527 = vcmp.ne.s32.totalorder %v511, 0
          %vm528 = vcmp.ne.s32.totalorder %v512, 0
          %vm529 = vcmp.ne.s32.totalorder %v513, 0
          %vm530 = vcmp.ne.s32.totalorder %v514, 0
          %vm531 = vcmp.ne.s32.totalorder %v515, 0
          %vm532 = vcmp.ne.s32.totalorder %v516, 0
          %533 = vrot.lane.b32.xlu0 %v468, 127
          %v534 = vpop.permute.xlu0 %533
          %535 = vrot.lane.b32.xlu0 %v469, 127
          %v536 = vpop.permute.xlu0 %535
          %537 = vrot.lane.b32.xlu0 %v470, 127
          %v538 = vpop.permute.xlu0 %537
          %539 = vrot.lane.b32.xlu0 %v471, 127
          %v540 = vpop.permute.xlu0 %539
          %541 = vrot.lane.b32.xlu0 %v472, 127
          %v542 = vpop.permute.xlu0 %541
          %543 = vrot.lane.b32.xlu0 %v473, 127
          %v544 = vpop.permute.xlu0 %543
          %545 = vrot.lane.b32.xlu0 %v474, 127
          %v546 = vpop.permute.xlu0 %545
          %547 = vrot.lane.b32.xlu0 %v475, 127
          %v548 = vpop.permute.xlu0 %547
          %549 = vrot.lane.b32.xlu0 %v476, 127
          %v550 = vpop.permute.xlu0 %549
          %551 = vrot.lane.b32.xlu0 %v477, 127
          %v552 = vpop.permute.xlu0 %551
          %553 = vrot.lane.b32.xlu0 %v478, 127
          %v554 = vpop.permute.xlu0 %553
          %555 = vrot.lane.b32.xlu0 %v479, 127
          %v556 = vpop.permute.xlu0 %555
          %557 = vrot.lane.b32.xlu0 %v480, 127
          %v558 = vpop.permute.xlu0 %557
          %559 = vrot.lane.b32.xlu0 %v481, 127
          %v560 = vpop.permute.xlu0 %559
          %561 = vrot.lane.b32.xlu0 %v482, 127
          %v562 = vpop.permute.xlu0 %561
          %563 = vrot.lane.b32.xlu0 %v483, 127
          %v564 = vpop.permute.xlu0 %563
          %v565 = vsel %vm517, %v534, %v468
          %v566 = vsel %vm518, %v536, %v469
          %v567 = vsel %vm519, %v538, %v470
          %v568 = vsel %vm520, %v540, %v471
          %v569 = vsel %vm521, %v542, %v472
          %v570 = vsel %vm522, %v544, %v473
          %v571 = vsel %vm523, %v546, %v474
          %v572 = vsel %vm524, %v548, %v475
          %v573 = vsel %vm525, %v550, %v476
          %v574 = vsel %vm526, %v552, %v477
          %v575 = vsel %vm527, %v554, %v478
          %v576 = vsel %vm528, %v556, %v479
          %v577 = vsel %vm529, %v558, %v480
          %v578 = vsel %vm530, %v560, %v481
          %v579 = vsel %vm531, %v562, %v482
          %v580 = vsel %vm532, %v564, %v483
          %v581 = vand.u32 %v485, 2
          %v582 = vand.u32 %v486, 2
          %v583 = vand.u32 %v487, 2
          %v584 = vand.u32 %v488, 2
          %v585 = vand.u32 %v489, 2
          %v586 = vand.u32 %v490, 2
          %v587 = vand.u32 %v491, 2
          %v588 = vand.u32 %v492, 2
          %v589 = vand.u32 %v493, 2
          %v590 = vand.u32 %v494, 2
          %v591 = vand.u32 %v495, 2
          %v592 = vand.u32 %v496, 2
          %v593 = vand.u32 %v497, 2
          %v594 = vand.u32 %v498, 2
          %v595 = vand.u32 %v499, 2
          %v596 = vand.u32 %v500, 2
          %vm597 = vcmp.ne.s32.totalorder %v581, 0
          %vm598 = vcmp.ne.s32.totalorder %v582, 0
          %vm599 = vcmp.ne.s32.totalorder %v583, 0
          %vm600 = vcmp.ne.s32.totalorder %v584, 0
          %vm601 = vcmp.ne.s32.totalorder %v585, 0
          %vm602 = vcmp.ne.s32.totalorder %v586, 0
          %vm603 = vcmp.ne.s32.totalorder %v587, 0
          %vm604 = vcmp.ne.s32.totalorder %v588, 0
          %vm605 = vcmp.ne.s32.totalorder %v589, 0
          %vm606 = vcmp.ne.s32.totalorder %v590, 0
          %vm607 = vcmp.ne.s32.totalorder %v591, 0
          %vm608 = vcmp.ne.s32.totalorder %v592, 0
          %vm609 = vcmp.ne.s32.totalorder %v593, 0
          %vm610 = vcmp.ne.s32.totalorder %v594, 0
          %vm611 = vcmp.ne.s32.totalorder %v595, 0
          %vm612 = vcmp.ne.s32.totalorder %v596, 0
          %613 = vrot.lane.b32.xlu0 %v565, 126
          %v614 = vpop.permute.xlu0 %613
          %615 = vrot.lane.b32.xlu0 %v566, 126
          %v616 = vpop.permute.xlu0 %615
          %617 = vrot.lane.b32.xlu0 %v567, 126
          %v618 = vpop.permute.xlu0 %617
          %619 = vrot.lane.b32.xlu0 %v568, 126
          %v620 = vpop.permute.xlu0 %619
          %621 = vrot.lane.b32.xlu0 %v569, 126
          %v622 = vpop.permute.xlu0 %621
          %623 = vrot.lane.b32.xlu0 %v570, 126
          %v624 = vpop.permute.xlu0 %623
          %625 = vrot.lane.b32.xlu0 %v571, 126
          %v626 = vpop.permute.xlu0 %625
          %627 = vrot.lane.b32.xlu0 %v572, 126
          %v628 = vpop.permute.xlu0 %627
          %629 = vrot.lane.b32.xlu0 %v573, 126
          %v630 = vpop.permute.xlu0 %629
          %631 = vrot.lane.b32.xlu0 %v574, 126
          %v632 = vpop.permute.xlu0 %631
          %633 = vrot.lane.b32.xlu0 %v575, 126
          %v634 = vpop.permute.xlu0 %633
          %635 = vrot.lane.b32.xlu0 %v576, 126
          %v636 = vpop.permute.xlu0 %635
          %637 = vrot.lane.b32.xlu0 %v577, 126
          %v638 = vpop.permute.xlu0 %637
          %639 = vrot.lane.b32.xlu0 %v578, 126
          %v640 = vpop.permute.xlu0 %639
          %641 = vrot.lane.b32.xlu0 %v579, 126
          %v642 = vpop.permute.xlu0 %641
          %643 = vrot.lane.b32.xlu0 %v580, 126
          %v644 = vpop.permute.xlu0 %643
          %v645 = vsel %vm597, %v614, %v565
          %v646 = vsel %vm598, %v616, %v566
          %v647 = vsel %vm599, %v618, %v567
          %v648 = vsel %vm600, %v620, %v568
          %v649 = vsel %vm601, %v622, %v569
          %v650 = vsel %vm602, %v624, %v570
          %v651 = vsel %vm603, %v626, %v571
          %v652 = vsel %vm604, %v628, %v572
          %v653 = vsel %vm605, %v630, %v573
          %v654 = vsel %vm606, %v632, %v574
          %v655 = vsel %vm607, %v634, %v575
          %v656 = vsel %vm608, %v636, %v576
          %v657 = vsel %vm609, %v638, %v577
          %v658 = vsel %vm610, %v640, %v578
          %v659 = vsel %vm611, %v642, %v579
          %v660 = vsel %vm612, %v644, %v580
          %v661 = vand.u32 %v485, 4
          %v662 = vand.u32 %v486, 4
          %v663 = vand.u32 %v487, 4
          %v664 = vand.u32 %v488, 4
          %v665 = vand.u32 %v489, 4
          %v666 = vand.u32 %v490, 4
          %v667 = vand.u32 %v491, 4
          %v668 = vand.u32 %v492, 4
          %v669 = vand.u32 %v493, 4
          %v670 = vand.u32 %v494, 4
          %v671 = vand.u32 %v495, 4
          %v672 = vand.u32 %v496, 4
          %v673 = vand.u32 %v497, 4
          %v674 = vand.u32 %v498, 4
          %v675 = vand.u32 %v499, 4
          %v676 = vand.u32 %v500, 4
          %vm677 = vcmp.ne.s32.totalorder %v661, 0
          %vm678 = vcmp.ne.s32.totalorder %v662, 0
          %vm679 = vcmp.ne.s32.totalorder %v663, 0
          %vm680 = vcmp.ne.s32.totalorder %v664, 0
          %vm681 = vcmp.ne.s32.totalorder %v665, 0
          %vm682 = vcmp.ne.s32.totalorder %v666, 0
          %vm683 = vcmp.ne.s32.totalorder %v667, 0
          %vm684 = vcmp.ne.s32.totalorder %v668, 0
          %vm685 = vcmp.ne.s32.totalorder %v669, 0
          %vm686 = vcmp.ne.s32.totalorder %v670, 0
          %vm687 = vcmp.ne.s32.totalorder %v671, 0
          %vm688 = vcmp.ne.s32.totalorder %v672, 0
          %vm689 = vcmp.ne.s32.totalorder %v673, 0
          %vm690 = vcmp.ne.s32.totalorder %v674, 0
          %vm691 = vcmp.ne.s32.totalorder %v675, 0
          %vm692 = vcmp.ne.s32.totalorder %v676, 0
          %693 = vrot.lane.b32.xlu0 %v645, 124
          %v694 = vpop.permute.xlu0 %693
          %695 = vrot.lane.b32.xlu0 %v646, 124
          %v696 = vpop.permute.xlu0 %695
          %697 = vrot.lane.b32.xlu0 %v647, 124
          %v698 = vpop.permute.xlu0 %697
          %699 = vrot.lane.b32.xlu0 %v648, 124
          %v700 = vpop.permute.xlu0 %699
          %701 = vrot.lane.b32.xlu0 %v649, 124
          %v702 = vpop.permute.xlu0 %701
          %703 = vrot.lane.b32.xlu0 %v650, 124
          %v704 = vpop.permute.xlu0 %703
          %705 = vrot.lane.b32.xlu0 %v651, 124
          %v706 = vpop.permute.xlu0 %705
          %707 = vrot.lane.b32.xlu0 %v652, 124
          %v708 = vpop.permute.xlu0 %707
          %709 = vrot.lane.b32.xlu0 %v653, 124
          %v710 = vpop.permute.xlu0 %709
          %711 = vrot.lane.b32.xlu0 %v654, 124
          %v712 = vpop.permute.xlu0 %711
          %713 = vrot.lane.b32.xlu0 %v655, 124
          %v714 = vpop.permute.xlu0 %713
          %715 = vrot.lane.b32.xlu0 %v656, 124
          %v716 = vpop.permute.xlu0 %715
          %717 = vrot.lane.b32.xlu0 %v657, 124
          %v718 = vpop.permute.xlu0 %717
          %719 = vrot.lane.b32.xlu0 %v658, 124
          %v720 = vpop.permute.xlu0 %719
          %721 = vrot.lane.b32.xlu0 %v659, 124
          %v722 = vpop.permute.xlu0 %721
          %723 = vrot.lane.b32.xlu0 %v660, 124
          %v724 = vpop.permute.xlu0 %723
          %v725 = vsel %vm677, %v694, %v645
          %v726 = vsel %vm678, %v696, %v646
          %v727 = vsel %vm679, %v698, %v647
          %v728 = vsel %vm680, %v700, %v648
          %v729 = vsel %vm681, %v702, %v649
          %v730 = vsel %vm682, %v704, %v650
          %v731 = vsel %vm683, %v706, %v651
          %v732 = vsel %vm684, %v708, %v652
          %v733 = vsel %vm685, %v710, %v653
          %v734 = vsel %vm686, %v712, %v654
          %v735 = vsel %vm687, %v714, %v655
          %v736 = vsel %vm688, %v716, %v656
          %v737 = vsel %vm689, %v718, %v657
          %v738 = vsel %vm690, %v720, %v658
          %v739 = vsel %vm691, %v722, %v659
          %v740 = vsel %vm692, %v724, %v660
          %v741 = vand.u32 %v485, 8
          %v742 = vand.u32 %v486, 8
          %v743 = vand.u32 %v487, 8
          %v744 = vand.u32 %v488, 8
          %v745 = vand.u32 %v489, 8
          %v746 = vand.u32 %v490, 8
          %v747 = vand.u32 %v491, 8
          %v748 = vand.u32 %v492, 8
          %v749 = vand.u32 %v493, 8
          %v750 = vand.u32 %v494, 8
          %v751 = vand.u32 %v495, 8
          %v752 = vand.u32 %v496, 8
          %v753 = vand.u32 %v497, 8
          %v754 = vand.u32 %v498, 8
          %v755 = vand.u32 %v499, 8
          %v756 = vand.u32 %v500, 8
          %vm757 = vcmp.ne.s32.totalorder %v741, 0
          %vm758 = vcmp.ne.s32.totalorder %v742, 0
          %vm759 = vcmp.ne.s32.totalorder %v743, 0
          %vm760 = vcmp.ne.s32.totalorder %v744, 0
          %vm761 = vcmp.ne.s32.totalorder %v745, 0
          %vm762 = vcmp.ne.s32.totalorder %v746, 0
          %vm763 = vcmp.ne.s32.totalorder %v747, 0
          %vm764 = vcmp.ne.s32.totalorder %v748, 0
          %vm765 = vcmp.ne.s32.totalorder %v749, 0
          %vm766 = vcmp.ne.s32.totalorder %v750, 0
          %vm767 = vcmp.ne.s32.totalorder %v751, 0
          %vm768 = vcmp.ne.s32.totalorder %v752, 0
          %vm769 = vcmp.ne.s32.totalorder %v753, 0
          %vm770 = vcmp.ne.s32.totalorder %v754, 0
          %vm771 = vcmp.ne.s32.totalorder %v755, 0
          %vm772 = vcmp.ne.s32.totalorder %v756, 0
          %773 = vrot.lane.b32.xlu0 %v725, 120
          %v774 = vpop.permute.xlu0 %773
          %775 = vrot.lane.b32.xlu0 %v726, 120
          %v776 = vpop.permute.xlu0 %775
          %777 = vrot.lane.b32.xlu0 %v727, 120
          %v778 = vpop.permute.xlu0 %777
          %779 = vrot.lane.b32.xlu0 %v728, 120
          %v780 = vpop.permute.xlu0 %779
          %781 = vrot.lane.b32.xlu0 %v729, 120
          %v782 = vpop.permute.xlu0 %781
          %783 = vrot.lane.b32.xlu0 %v730, 120
          %v784 = vpop.permute.xlu0 %783
          %785 = vrot.lane.b32.xlu0 %v731, 120
          %v786 = vpop.permute.xlu0 %785
          %787 = vrot.lane.b32.xlu0 %v732, 120
          %v788 = vpop.permute.xlu0 %787
          %789 = vrot.lane.b32.xlu0 %v733, 120
          %v790 = vpop.permute.xlu0 %789
          %791 = vrot.lane.b32.xlu0 %v734, 120
          %v792 = vpop.permute.xlu0 %791
          %793 = vrot.lane.b32.xlu0 %v735, 120
          %v794 = vpop.permute.xlu0 %793
          %795 = vrot.lane.b32.xlu0 %v736, 120
          %v796 = vpop.permute.xlu0 %795
          %797 = vrot.lane.b32.xlu0 %v737, 120
          %v798 = vpop.permute.xlu0 %797
          %799 = vrot.lane.b32.xlu0 %v738, 120
          %v800 = vpop.permute.xlu0 %799
          %801 = vrot.lane.b32.xlu0 %v739, 120
          %v802 = vpop.permute.xlu0 %801
          %803 = vrot.lane.b32.xlu0 %v740, 120
          %v804 = vpop.permute.xlu0 %803
          %v805 = vsel %vm757, %v774, %v725
          %v806 = vsel %vm758, %v776, %v726
          %v807 = vsel %vm759, %v778, %v727
          %v808 = vsel %vm760, %v780, %v728
          %v809 = vsel %vm761, %v782, %v729
          %v810 = vsel %vm762, %v784, %v730
          %v811 = vsel %vm763, %v786, %v731
          %v812 = vsel %vm764, %v788, %v732
          %v813 = vsel %vm765, %v790, %v733
          %v814 = vsel %vm766, %v792, %v734
          %v815 = vsel %vm767, %v794, %v735
          %v816 = vsel %vm768, %v796, %v736
          %v817 = vsel %vm769, %v798, %v737
          %v818 = vsel %vm770, %v800, %v738
          %v819 = vsel %vm771, %v802, %v739
          %v820 = vsel %vm772, %v804, %v740
          %v821 = vand.u32 %v485, 16
          %v822 = vand.u32 %v486, 16
          %v823 = vand.u32 %v487, 16
          %v824 = vand.u32 %v488, 16
          %v825 = vand.u32 %v489, 16
          %v826 = vand.u32 %v490, 16
          %v827 = vand.u32 %v491, 16
          %v828 = vand.u32 %v492, 16
          %v829 = vand.u32 %v493, 16
          %v830 = vand.u32 %v494, 16
          %v831 = vand.u32 %v495, 16
          %v832 = vand.u32 %v496, 16
          %v833 = vand.u32 %v497, 16
          %v834 = vand.u32 %v498, 16
          %v835 = vand.u32 %v499, 16
          %v836 = vand.u32 %v500, 16
          %vm837 = vcmp.ne.s32.totalorder %v821, 0
          %vm838 = vcmp.ne.s32.totalorder %v822, 0
          %vm839 = vcmp.ne.s32.totalorder %v823, 0
          %vm840 = vcmp.ne.s32.totalorder %v824, 0
          %vm841 = vcmp.ne.s32.totalorder %v825, 0
          %vm842 = vcmp.ne.s32.totalorder %v826, 0
          %vm843 = vcmp.ne.s32.totalorder %v827, 0
          %vm844 = vcmp.ne.s32.totalorder %v828, 0
          %vm845 = vcmp.ne.s32.totalorder %v829, 0
          %vm846 = vcmp.ne.s32.totalorder %v830, 0
          %vm847 = vcmp.ne.s32.totalorder %v831, 0
          %vm848 = vcmp.ne.s32.totalorder %v832, 0
          %vm849 = vcmp.ne.s32.totalorder %v833, 0
          %vm850 = vcmp.ne.s32.totalorder %v834, 0
          %vm851 = vcmp.ne.s32.totalorder %v835, 0
          %vm852 = vcmp.ne.s32.totalorder %v836, 0
          %853 = vrot.lane.b32.xlu0 %v805, 112
          %v854 = vpop.permute.xlu0 %853
          %855 = vrot.lane.b32.xlu0 %v806, 112
          %v856 = vpop.permute.xlu0 %855
          %857 = vrot.lane.b32.xlu0 %v807, 112
          %v858 = vpop.permute.xlu0 %857
          %859 = vrot.lane.b32.xlu0 %v808, 112
          %v860 = vpop.permute.xlu0 %859
          %861 = vrot.lane.b32.xlu0 %v809, 112
          %v862 = vpop.permute.xlu0 %861
          %863 = vrot.lane.b32.xlu0 %v810, 112
          %v864 = vpop.permute.xlu0 %863
          %865 = vrot.lane.b32.xlu0 %v811, 112
          %v866 = vpop.permute.xlu0 %865
          %867 = vrot.lane.b32.xlu0 %v812, 112
          %v868 = vpop.permute.xlu0 %867
          %869 = vrot.lane.b32.xlu0 %v813, 112
          %v870 = vpop.permute.xlu0 %869
          %871 = vrot.lane.b32.xlu0 %v814, 112
          %v872 = vpop.permute.xlu0 %871
          %873 = vrot.lane.b32.xlu0 %v815, 112
          %v874 = vpop.permute.xlu0 %873
          %875 = vrot.lane.b32.xlu0 %v816, 112
          %v876 = vpop.permute.xlu0 %875
          %877 = vrot.lane.b32.xlu0 %v817, 112
          %v878 = vpop.permute.xlu0 %877
          %879 = vrot.lane.b32.xlu0 %v818, 112
          %v880 = vpop.permute.xlu0 %879
          %881 = vrot.lane.b32.xlu0 %v819, 112
          %v882 = vpop.permute.xlu0 %881
          %883 = vrot.lane.b32.xlu0 %v820, 112
          %v884 = vpop.permute.xlu0 %883
          %v885 = vsel %vm837, %v854, %v805
          %v886 = vsel %vm838, %v856, %v806
          %v887 = vsel %vm839, %v858, %v807
          %v888 = vsel %vm840, %v860, %v808
          %v889 = vsel %vm841, %v862, %v809
          %v890 = vsel %vm842, %v864, %v810
          %v891 = vsel %vm843, %v866, %v811
          %v892 = vsel %vm844, %v868, %v812
          %v893 = vsel %vm845, %v870, %v813
          %v894 = vsel %vm846, %v872, %v814
          %v895 = vsel %vm847, %v874, %v815
          %v896 = vsel %vm848, %v876, %v816
          %v897 = vsel %vm849, %v878, %v817
          %v898 = vsel %vm850, %v880, %v818
          %v899 = vsel %vm851, %v882, %v819
          %v900 = vsel %vm852, %v884, %v820
          %v901 = vand.u32 %v485, 32
          %v902 = vand.u32 %v486, 32
          %v903 = vand.u32 %v487, 32
          %v904 = vand.u32 %v488, 32
          %v905 = vand.u32 %v489, 32
          %v906 = vand.u32 %v490, 32
          %v907 = vand.u32 %v491, 32
          %v908 = vand.u32 %v492, 32
          %v909 = vand.u32 %v493, 32
          %v910 = vand.u32 %v494, 32
          %v911 = vand.u32 %v495, 32
          %v912 = vand.u32 %v496, 32
          %v913 = vand.u32 %v497, 32
          %v914 = vand.u32 %v498, 32
          %v915 = vand.u32 %v499, 32
          %v916 = vand.u32 %v500, 32
          %vm917 = vcmp.ne.s32.totalorder %v901, 0
          %vm918 = vcmp.ne.s32.totalorder %v902, 0
          %vm919 = vcmp.ne.s32.totalorder %v903, 0
          %vm920 = vcmp.ne.s32.totalorder %v904, 0
          %vm921 = vcmp.ne.s32.totalorder %v905, 0
          %vm922 = vcmp.ne.s32.totalorder %v906, 0
          %vm923 = vcmp.ne.s32.totalorder %v907, 0
          %vm924 = vcmp.ne.s32.totalorder %v908, 0
          %vm925 = vcmp.ne.s32.totalorder %v909, 0
          %vm926 = vcmp.ne.s32.totalorder %v910, 0
          %vm927 = vcmp.ne.s32.totalorder %v911, 0
          %vm928 = vcmp.ne.s32.totalorder %v912, 0
          %vm929 = vcmp.ne.s32.totalorder %v913, 0
          %vm930 = vcmp.ne.s32.totalorder %v914, 0
          %vm931 = vcmp.ne.s32.totalorder %v915, 0
          %vm932 = vcmp.ne.s32.totalorder %v916, 0
          %933 = vrot.lane.b32.xlu0 %v885, 96
          %v934 = vpop.permute.xlu0 %933
          %935 = vrot.lane.b32.xlu0 %v886, 96
          %v936 = vpop.permute.xlu0 %935
          %937 = vrot.lane.b32.xlu0 %v887, 96
          %v938 = vpop.permute.xlu0 %937
          %939 = vrot.lane.b32.xlu0 %v888, 96
          %v940 = vpop.permute.xlu0 %939
          %941 = vrot.lane.b32.xlu0 %v889, 96
          %v942 = vpop.permute.xlu0 %941
          %943 = vrot.lane.b32.xlu0 %v890, 96
          %v944 = vpop.permute.xlu0 %943
          %945 = vrot.lane.b32.xlu0 %v891, 96
          %v946 = vpop.permute.xlu0 %945
          %947 = vrot.lane.b32.xlu0 %v892, 96
          %v948 = vpop.permute.xlu0 %947
          %949 = vrot.lane.b32.xlu0 %v893, 96
          %v950 = vpop.permute.xlu0 %949
          %951 = vrot.lane.b32.xlu0 %v894, 96
          %v952 = vpop.permute.xlu0 %951
          %953 = vrot.lane.b32.xlu0 %v895, 96
          %v954 = vpop.permute.xlu0 %953
          %955 = vrot.lane.b32.xlu0 %v896, 96
          %v956 = vpop.permute.xlu0 %955
          %957 = vrot.lane.b32.xlu0 %v897, 96
          %v958 = vpop.permute.xlu0 %957
          %959 = vrot.lane.b32.xlu0 %v898, 96
          %v960 = vpop.permute.xlu0 %959
          %961 = vrot.lane.b32.xlu0 %v899, 96
          %v962 = vpop.permute.xlu0 %961
          %963 = vrot.lane.b32.xlu0 %v900, 96
          %v964 = vpop.permute.xlu0 %963
          %v965 = vsel %vm917, %v934, %v885
          %v966 = vsel %vm918, %v936, %v886
          %v967 = vsel %vm919, %v938, %v887
          %v968 = vsel %vm920, %v940, %v888
          %v969 = vsel %vm921, %v942, %v889
          %v970 = vsel %vm922, %v944, %v890
          %v971 = vsel %vm923, %v946, %v891
          %v972 = vsel %vm924, %v948, %v892
          %v973 = vsel %vm925, %v950, %v893
          %v974 = vsel %vm926, %v952, %v894
          %v975 = vsel %vm927, %v954, %v895
          %v976 = vsel %vm928, %v956, %v896
          %v977 = vsel %vm929, %v958, %v897
          %v978 = vsel %vm930, %v960, %v898
          %v979 = vsel %vm931, %v962, %v899
          %v980 = vsel %vm932, %v964, %v900
          %v981 = vand.u32 %v485, 64
          %v982 = vand.u32 %v486, 64
          %v983 = vand.u32 %v487, 64
          %v984 = vand.u32 %v488, 64
          %v985 = vand.u32 %v489, 64
          %v986 = vand.u32 %v490, 64
          %v987 = vand.u32 %v491, 64
          %v988 = vand.u32 %v492, 64
          %v989 = vand.u32 %v493, 64
          %v990 = vand.u32 %v494, 64
          %v991 = vand.u32 %v495, 64
          %v992 = vand.u32 %v496, 64
          %v993 = vand.u32 %v497, 64
          %v994 = vand.u32 %v498, 64
          %v995 = vand.u32 %v499, 64
          %v996 = vand.u32 %v500, 64
          %vm997 = vcmp.ne.s32.totalorder %v981, 0
          %vm998 = vcmp.ne.s32.totalorder %v982, 0
          %vm999 = vcmp.ne.s32.totalorder %v983, 0
          %vm1000 = vcmp.ne.s32.totalorder %v984, 0
          %vm1001 = vcmp.ne.s32.totalorder %v985, 0
          %vm1002 = vcmp.ne.s32.totalorder %v986, 0
          %vm1003 = vcmp.ne.s32.totalorder %v987, 0
          %vm1004 = vcmp.ne.s32.totalorder %v988, 0
          %vm1005 = vcmp.ne.s32.totalorder %v989, 0
          %vm1006 = vcmp.ne.s32.totalorder %v990, 0
          %vm1007 = vcmp.ne.s32.totalorder %v991, 0
          %vm1008 = vcmp.ne.s32.totalorder %v992, 0
          %vm1009 = vcmp.ne.s32.totalorder %v993, 0
          %vm1010 = vcmp.ne.s32.totalorder %v994, 0
          %vm1011 = vcmp.ne.s32.totalorder %v995, 0
          %vm1012 = vcmp.ne.s32.totalorder %v996, 0
          %1013 = vrot.lane.b32.xlu0 %v965, 64
          %v1014 = vpop.permute.xlu0 %1013
          %1015 = vrot.lane.b32.xlu0 %v966, 64
          %v1016 = vpop.permute.xlu0 %1015
          %1017 = vrot.lane.b32.xlu0 %v967, 64
          %v1018 = vpop.permute.xlu0 %1017
          %1019 = vrot.lane.b32.xlu0 %v968, 64
          %v1020 = vpop.permute.xlu0 %1019
          %1021 = vrot.lane.b32.xlu0 %v969, 64
          %v1022 = vpop.permute.xlu0 %1021
          %1023 = vrot.lane.b32.xlu0 %v970, 64
          %v1024 = vpop.permute.xlu0 %1023
          %1025 = vrot.lane.b32.xlu0 %v971, 64
          %v1026 = vpop.permute.xlu0 %1025
          %1027 = vrot.lane.b32.xlu0 %v972, 64
          %v1028 = vpop.permute.xlu0 %1027
          %1029 = vrot.lane.b32.xlu0 %v973, 64
          %v1030 = vpop.permute.xlu0 %1029
          %1031 = vrot.lane.b32.xlu0 %v974, 64
          %v1032 = vpop.permute.xlu0 %1031
          %1033 = vrot.lane.b32.xlu0 %v975, 64
          %v1034 = vpop.permute.xlu0 %1033
          %1035 = vrot.lane.b32.xlu0 %v976, 64
          %v1036 = vpop.permute.xlu0 %1035
          %1037 = vrot.lane.b32.xlu0 %v977, 64
          %v1038 = vpop.permute.xlu0 %1037
          %1039 = vrot.lane.b32.xlu0 %v978, 64
          %v1040 = vpop.permute.xlu0 %1039
          %1041 = vrot.lane.b32.xlu0 %v979, 64
          %v1042 = vpop.permute.xlu0 %1041
          %1043 = vrot.lane.b32.xlu0 %v980, 64
          %v1044 = vpop.permute.xlu0 %1043
          %v1045 = vsel %vm997, %v1014, %v965
          %v1046 = vsel %vm998, %v1016, %v966
          %v1047 = vsel %vm999, %v1018, %v967
          %v1048 = vsel %vm1000, %v1020, %v968
          %v1049 = vsel %vm1001, %v1022, %v969
          %v1050 = vsel %vm1002, %v1024, %v970
          %v1051 = vsel %vm1003, %v1026, %v971
          %v1052 = vsel %vm1004, %v1028, %v972
          %v1053 = vsel %vm1005, %v1030, %v973
          %v1054 = vsel %vm1006, %v1032, %v974
          %v1055 = vsel %vm1007, %v1034, %v975
          %v1056 = vsel %vm1008, %v1036, %v976
          %v1057 = vsel %vm1009, %v1038, %v977
          %v1058 = vsel %vm1010, %v1040, %v978
          %v1059 = vsel %vm1011, %v1042, %v979
          %v1060 = vsel %vm1012, %v1044, %v980
          %v1061 = vadd.f32 %v1045, %v1046
          %v1062 = vadd.f32 %v1061, %v1047
          %v1063 = vadd.f32 %v1062, %v1048
          %v1064 = vadd.f32 %v1063, %v1049
          %v1065 = vadd.f32 %v1064, %v1050
          %v1066 = vadd.f32 %v1065, %v1051
          %v1067 = vadd.f32 %v1066, %v1052
          %v1068 = vadd.f32 %v1067, %v1053
          %v1069 = vadd.f32 %v1068, %v1054
          %v1070 = vadd.f32 %v1069, %v1055
          %v1071 = vadd.f32 %v1070, %v1056
          %v1072 = vadd.f32 %v1071, %v1057
          %v1073 = vadd.f32 %v1072, %v1058
          %v1074 = vadd.f32 %v1073, %v1059
          %v1075 = vadd.f32 %v1074, %v1060
          %v1076 = vrot.slane %v1075, 4
          %v1077 = vadd.f32 %v1075, %v1076
          %v1078 = vrot.slane %v1077, 2
          %v1079 = vadd.f32 %v1077, %v1078
          %v1080 = vrot.slane %v1079, 1
          %v1081 = vadd.f32 %v1079, %v1080
          %v1082 = vmul.f32 %v1081, 0.00390625
          %1083 = vst [vmem:[%s218] sm:$0x1] %v1082
        $region44: #{tpu_custom_call.1} parent=27 // pred_fallthru
          _
        %s1084 = sand.u32 %s98, 1
        %s1085 = scalar_lea.sflag [#allocation5], %s1084
        %s1086 = sand.u32 %s98, 1
        %s1087 = scalar_lea.vmem [#allocation8], %s1086
        // Predicated region
        $region45: #{tpu_custom_call.1} parent=27 // pred_check
          %p1088 = pneg %p108
        $region46: #{tpu_custom_call.1} parent=27 // pred_check_branch
          %1090 = sbr.rel (%p1088) target = $region48
        $region47: #{tpu_custom_call.1} parent=27 // pred_region
          %s1092 = ssub.s32 16, 16
          %1093 = vsyncadd %s1085, %s1092
          %s1094 = smul.addr %s26, 16
          %s1095 = scalar_lea.hbm %s2, %s1094
          %s1097 = sshll.u32 %s1087, 4
          %s1098 = int_to_ptr.vmem [resolvable:$true] %s1097
          %1100 = dma.vmem_to_hbm [thread:$0]  %s1098, 16, %s1095, %s1085
        $region48: #{tpu_custom_call.1} parent=27 // pred_fallthru
          _
      $region28: #{tpu_custom_call.1} parent=5 // pred_fallthru
        _
      %p1101 = scmp.le.s32.totalorder 2, %s17
      // Predicated region
      $region49: #{tpu_custom_call.1} parent=5 // pred_check
        %p1102 = pneg %p1101
      $region50: #{tpu_custom_call.1} parent=5 // pred_check_branch
        %1104 = sbr.rel (%p1102) target = $region52
      $region51: #{tpu_custom_call.1} parent=5 // pred_region
        %s1105 = ssub.s32 %s17, 2
        // Predicated region
        $region53: #{tpu_custom_call.1} parent=51 // pred_check
          %p1106 = pneg %p114
        $region54: #{tpu_custom_call.1} parent=51 // pred_check_branch
          %1108 = sbr.rel (%p1106) target = $region56
        $region55: #{tpu_custom_call.1} parent=51 // pred_region
          %s1109 = sand.u32 %s99, 1
          %s1110 = scalar_lea.sflag [#allocation5], %s1109
          %s1111 = sand.u32 %s99, 1
          %s1112 = scalar_lea.vmem [#allocation8], %s1111
          %1113 = dma.done %s1110, 16
        $region56: #{tpu_custom_call.1} parent=51 // pred_fallthru
          _
      $region52: #{tpu_custom_call.1} parent=5 // pred_fallthru
        _
    $region6: #{tpu_custom_call.1} parent=1 // loop_footer
      %s21 = sadd.s32 1, %s17
    $region7: #{tpu_custom_call.1} parent=1 // loop_footer_branch
      %16 = sbr.rel target = $region3
    $region8: #{tpu_custom_call.1} parent=1 // loop_exit
      _
    %1114 = vsyncpa [#allocation4], 1
    %s1115 = scalar_lea.sflag [#allocation4], 1
    %1116 = vsyncpa %s1115, 1
    %1117 = vsyncpa [#allocation7], 1
    %s1118 = scalar_lea.sflag [#allocation7], 1
    %1119 = vsyncpa %s1118, 1
    %1120 = vsyncpa [#allocation5], 1
    %s1121 = scalar_lea.sflag [#allocation5], 1
    %1122 = vsyncpa %s1121, 1

</llo_original>
